<compile_context>
chip_gen: v7x
topology: tpu7x:2x2x1
jax: 0.10.0
libtpu: 0.0.40
codegen_flags: <defaults>
</compile_context>

<pallas_src>
import functools

import jax
import jax.numpy as jnp
from jax.experimental import pallas as pl
from jax.experimental.pallas import tpu as pltpu

EPS = 1e-5  # PyTorch BatchNorm1d default eps


def _round_up(n, m):
    return -(-n // m) * m


def _resblock_kernel(x_ref, w1_ref, b1_ref, w2_ref, b2_ref, alpha_ref, o_ref,
                     *, downsample, c_pad):
    """One (batch, time-tile) block of the fused ResBlock.

    x_ref:     (3, Cin, TT) bf16 — the 3 MaxPool window positions (deinterleaved).
    w1_ref:    (2*Cp, Cin)  bf16 stacked [BN1-folded conv1 ; downsample proj] if projecting,
               else (Cout, Cin) BN1-folded conv1.
    w2_ref:    (Cp, Cp)     bf16 BN2-folded conv2.
    b1/b2_ref: (Cp, 1)      f32 folded biases.
    alpha_ref: (2,)         f32 PReLU alphas (SMEM).
    o_ref:     (Cp, TT)     pooled output tile (batch dim squeezed).
    """
    a1 = alpha_ref[0]
    a2 = alpha_ref[1]

    # Hoist constant Ref reads out of the 3-way unroll (not CSE'd otherwise).
    w1 = w1_ref[...]
    b1 = b1_ref[...]
    w2 = w2_ref[...]
    b2 = b2_ref[...]

    pooled = None
    # Static unroll over the 3 pooling-window positions; pooling = running VPU max.
    for j in range(3):
        xj = x_ref[j]                                                # (Cin, TT) bf16

        # Conv1d(k=1) (+ optional downsample projection) as one MXU matmul, f32 acc.
        y = jnp.dot(w1, xj, preferred_element_type=jnp.float32)
        if downsample:
            h = y[:c_pad] + b1          # c_pad % 8 == 0 -> sublane-aligned split
            res = y[c_pad:]             # wd @ x (no bias)
        else:
            h = y + b1
            res = xj.astype(jnp.float32)                             # identity skip

        h = jnp.where(h >= 0, h, a1 * h)                             # PReLU 1
        h = jnp.dot(w2, h.astype(w2.dtype),
                    preferred_element_type=jnp.float32) + b2         # conv2 + BN2

        out = h + res
        out = jnp.where(out >= 0, out, a2 * out)                     # sblock PReLU

        pooled = out if pooled is None else jnp.maximum(pooled, out)

    o_ref[...] = pooled.astype(o_ref.dtype)


def res_block(x, params, *, tile_lanes=2048, out_dtype=jnp.float32,
              vmem_budget_bytes=None):
    """x: (B, Cin, T) float. Returns (B, Cout, T // 3) in out_dtype."""
    B, Cin, T = x.shape
    Cout = params["w1"].shape[0]
    downsample = Cin != Cout

    f32, bf16 = jnp.float32, jnp.bfloat16

    # ---- host-side BN folding: BN(Wx + b) == (s*W) x + (s*(b - m) + beta) ----
    def fold(w, b, g, be, m, v):
        s = g * jax.lax.rsqrt(v + EPS)
        return w * s[:, None], (s * (b - m) + be).reshape(-1, 1).astype(f32)

    w1f, b1f = fold(params["w1"], params["b1"], params["g1"], params["be1"],
                    params["m1"], params["v1"])
    w2f, b2f = fold(params["w2"], params["b2"], params["g2"], params["be2"],
                    params["m2"], params["v2"])

    if downsample:
        # Pad Cout up to a multiple of 8 so the stacked-matmul split is tile aligned.
        Cp = _round_up(Cout, 8)
        pc = Cp - Cout
        w1s = jnp.concatenate(
            [jnp.pad(w1f, ((0, pc), (0, 0))),
             jnp.pad(params["wd"], ((0, pc), (0, 0)))], axis=0)      # (2*Cp, Cin)
        b1f = jnp.pad(b1f, ((0, pc), (0, 0)))
        b2f = jnp.pad(b2f, ((0, pc), (0, 0)))
        w2f = jnp.pad(w2f, ((0, pc), (0, pc)))
    else:
        Cp = Cout
        w1s = w1f

    w1s = w1s.astype(bf16)
    w2f = w2f.astype(bf16)
    alphas = jnp.stack([jnp.asarray(params["a1"], f32),
                        jnp.asarray(params["a2"], f32)])             # (2,) -> SMEM

    # ---- layout plumbing (one fused XLA pass under jit): deinterleave the 3 MaxPool
    # window positions and cast to bf16.  x_r[b, j, c, p] = x[b, c, 3p + j].
    # TODO(synk): ideally the producer layer emits this layout / bf16 directly.
    Tp = T // 3                                       # MaxPool1d(3) floor, PyTorch default
    x_r = jnp.transpose(x[..., :3 * Tp].reshape(B, Cin, Tp, 3), (0, 3, 1, 2))
    if x_r.dtype != bf16:
        x_r = x_r.astype(bf16)

    # ---- time (lane) tiling, VMEM-budgeted so it is safe on v5e/v6e/v7x ----
    tile_lanes = max(128, _round_up(tile_lanes, 128))
    out_isz = jnp.dtype(out_dtype).itemsize
    w1_rows = w1s.shape[0]

    def vmem_est(tt):
        x_buf = 2 * 3 * Cin * tt * 2                  # bf16 activations, double-buffered
        o_buf = 2 * Cp * tt * out_isz                 # output, double-buffered
        w_buf = 2 * ((w1_rows * Cin + Cp * Cp) * 2 + 2 * Cp * 4)
        tmp = (w1_rows + 6 * Cp) * tt * 4             # in-kernel f32 temporaries
        return x_buf + o_buf + w_buf + tmp

    budget = vmem_budget_bytes if vmem_budget_bytes is not None else (40 << 20)
    if Tp < 128:
        TT = Tp                                       # tiny case: full extent, no padding
    else:
        TT = min(tile_lanes, _round_up(Tp, 128))
        if B == 1:
            # Guarantee >= 2 grid steps so both v7x TensorCores get work / pipeline runs.
            TT = min(TT, max(128, _round_up(-(-Tp // 2), 128)))
        while TT > 128 and vmem_est(TT) > budget:
            TT -= 128
    Tp_pad = _round_up(Tp, TT)
    if Tp_pad != Tp:
        x_r = jnp.pad(x_r, ((0, 0), (0, 0), (0, 0), (0, Tp_pad - Tp)))
    n_t = Tp_pad // TT

    est = vmem_est(TT)
    cp_kwargs = dict(dimension_semantics=("parallel", "parallel"))
    if est > (12 << 20):                              # approaching v5e's 16 MiB default
        cp_kwargs["vmem_limit_bytes"] = int(min(48 << 20, 2 * est))

    flops = 2 * 3 * B * Tp_pad * (w1_rows * Cin + Cp * Cp)
    bytes_accessed = (x_r.size * 2 + B * Cp * Tp_pad * out_isz
                      + (w1s.size + w2f.size) * 2 + (b1f.size + b2f.size) * 4)

    kernel = functools.partial(_resblock_kernel, downsample=downsample, c_pad=Cp)

    out_p = pl.pallas_call(
        kernel,
        out_shape=jax.ShapeDtypeStruct((B, Cp, Tp_pad), out_dtype),
        grid=(B, n_t),
        in_specs=[
            pl.BlockSpec((None, 3, Cin, TT), lambda b, t: (b, 0, 0, t)),  # activations
            pl.BlockSpec(w1s.shape, lambda b, t: (0, 0)),                 # stacked conv1(+wd)
            pl.BlockSpec((Cp, 1), lambda b, t: (0, 0)),                   # folded bias1
            pl.BlockSpec((Cp, Cp), lambda b, t: (0, 0)),                  # folded conv2
            pl.BlockSpec((Cp, 1), lambda b, t: (0, 0)),                   # folded bias2
            pl.BlockSpec(memory_space=pltpu.MemorySpace.SMEM),            # PReLU alphas
        ],
        out_specs=pl.BlockSpec((None, Cp, TT), lambda b, t: (b, 0, t)),   # direct layout
        compiler_params=pltpu.CompilerParams(**cp_kwargs),
        cost_estimate=pl.CostEstimate(flops=int(flops), transcendentals=0,
                                      bytes_accessed=int(bytes_accessed)),
    )(x_r, w1s, b1f, w2f, b2f, alphas)

    if Cp != Cout or Tp_pad != Tp:
        out_p = out_p[:, :Cout, :Tp]
    return out_p


def res_block_ref(x, p):
    """Pure-JAX f32 reference (PyTorch semantics, BN in eval mode)."""
    def bn(h, g, be, m, v):
        inv = jax.lax.rsqrt(v + EPS)
        return (h - m[None, :, None]) * inv[None, :, None] * g[None, :, None] + be[None, :, None]

    h = jnp.einsum("oi,bit->bot", p["w1"], x) + p["b1"][None, :, None]
    h = bn(h, p["g1"], p["be1"], p["m1"], p["v1"])
    h = jnp.where(h >= 0, h, p["a1"] * h)
    h = jnp.einsum("oc,bct->bot", p["w2"], h) + p["b2"][None, :, None]
    h = bn(h, p["g2"], p["be2"], p["m2"], p["v2"])

    res = jnp.einsum("oi,bit->bot", p["wd"], x) if "wd" in p else x
    out = h + res
    out = jnp.where(out >= 0, out, p["a2"] * out)

    B, C, T = out.shape
    Tp = T // 3
    return jnp.max(out[..., : 3 * Tp].reshape(B, C, Tp, 3), axis=-1)


def make_params(key, c_in, c_out):
    ks = jax.random.split(key, 8)
    f32 = jnp.float32

    def bn_params(k):
        k0, k1, k2, k3 = jax.random.split(k, 4)
        g = jax.random.uniform(k0, (c_out,), f32, 0.5, 1.5)
        be = 0.1 * jax.random.normal(k1, (c_out,), f32)
        m = 0.2 * jax.random.normal(k2, (c_out,), f32)
        v = jax.random.uniform(k3, (c_out,), f32, 0.5, 1.5)
        return g, be, m, v

    g1, be1, m1, v1 = bn_params(ks[0])
    g2, be2, m2, v2 = bn_params(ks[1])

    p = dict(
        w1=0.3 * jax.random.normal(ks[2], (c_out, c_in), f32),
        b1=0.1 * jax.random.normal(ks[3], (c_out,), f32),
        g1=g1, be1=be1, m1=m1, v1=v1,
        a1=jnp.float32(0.25),                      # nn.PReLU() default init
        w2=0.3 * jax.random.normal(ks[4], (c_out, c_out), f32),
        b2=0.1 * jax.random.normal(ks[5], (c_out,), f32),
        g2=g2, be2=be2, m2=m2, v2=v2,
        a2=jnp.float32(0.25),
    )
    if c_in != c_out:
        p["wd"] = 0.3 * jax.random.normal(ks[6], (c_out, c_in), f32)
    return p


if __name__ == "__main__":
    key = jax.random.PRNGKey(0)
    kx, kp1, kp2 = jax.random.split(key, 3)

    B, Cin, Cout, T = 2, 4, 8, 24
    x = jax.random.normal(kx, (B, Cin, T), jnp.float32)

    run = jax.jit(res_block)   # jit so the wrapper layout pass fuses into one HLO fusion

    # Case 1: Cin != Cout -> projection residual (stacked, 8-aligned [w1; wd] matmul).
    p1 = make_params(kp1, Cin, Cout)
    out1 = jax.block_until_ready(run(x, p1))
    ref1 = res_block_ref(x, p1)
    assert out1.shape == (B, Cout, T // 3), out1.shape
    assert jnp.allclose(out1, ref1, atol=5e-2, rtol=5e-2), float(jnp.max(jnp.abs(out1 - ref1)))

    # Case 2: Cin == Cout -> identity residual (no wd matmul, plain add).
    p2 = make_params(kp2, Cin, Cin)
    out2 = jax.block_until_ready(run(x, p2))
    ref2 = res_block_ref(x, p2)
    assert out2.shape == (B, Cin, T // 3), out2.shape
    assert jnp.allclose(out2, ref2, atol=5e-2, rtol=5e-2), float(jnp.max(jnp.abs(out2 - ref2)))

    print("KERNEL_OK")
</pallas_src>

<mosaic_0001>
module attributes {stable_mosaic.version = 11 : i64} {
  func.func @_resblock_kernel(%arg0: i32, %arg1: i32, %arg2: memref<1x3x4x8xbf16, #tpu.memory_space<vmem>>, %arg3: memref<16x4xbf16, #tpu.memory_space<vmem>>, %arg4: memref<8x1xf32, #tpu.memory_space<vmem>>, %arg5: memref<8x8xbf16, #tpu.memory_space<vmem>>, %arg6: memref<8x1xf32, #tpu.memory_space<vmem>>, %arg7: memref<2xf32, #tpu.memory_space<smem>>, %arg8: memref<1x8x8xf32, #tpu.memory_space<vmem>>) attributes {dimension_semantics = [#tpu.dimension_semantics<parallel>, #tpu.dimension_semantics<parallel>], iteration_bounds = array<i64: 2, 1>, scalar_prefetch = 0 : i64, scratch_operands = 0 : i64, tpu.core_type = #tpu.core_type<tc>, window_params = [{transform_indices = @transform_0, window_bounds = array<i64: 1, 3, 4, 8>}, {pipeline_mode = #tpu.pipeline_mode<synchronous>, transform_indices = @transform_1, window_bounds = array<i64: 16, 4>}, {pipeline_mode = #tpu.pipeline_mode<synchronous>, transform_indices = @transform_2, window_bounds = array<i64: 8, 1>}, {pipeline_mode = #tpu.pipeline_mode<synchronous>, transform_indices = @transform_3, window_bounds = array<i64: 8, 8>}, {pipeline_mode = #tpu.pipeline_mode<synchronous>, transform_indices = @transform_4, window_bounds = array<i64: 8, 1>}, {transform_indices = @transform_5, window_bounds = array<i64: 2>}, {transform_indices = @transform_6, window_bounds = array<i64: 1, 8, 8>}]} {
    %c0 = arith.constant 0 : index
    %0 = memref.load %arg7[%c0] : memref<2xf32, #tpu.memory_space<smem>>
    %c1 = arith.constant 1 : index
    %1 = memref.load %arg7[%c1] : memref<2xf32, #tpu.memory_space<smem>>
    %c0_0 = arith.constant 0 : index
    %c0_1 = arith.constant 0 : index
    %2 = vector.load %arg3[%c0_0, %c0_1] : memref<16x4xbf16, #tpu.memory_space<vmem>>, vector<16x4xbf16>
    %c0_2 = arith.constant 0 : index
    %c0_3 = arith.constant 0 : index
    %3 = vector.load %arg4[%c0_2, %c0_3] : memref<8x1xf32, #tpu.memory_space<vmem>>, vector<8x1xf32>
    %c0_4 = arith.constant 0 : index
    %c0_5 = arith.constant 0 : index
    %4 = vector.load %arg5[%c0_4, %c0_5] : memref<8x8xbf16, #tpu.memory_space<vmem>>, vector<8x8xbf16>
    %c0_6 = arith.constant 0 : index
    %c0_7 = arith.constant 0 : index
    %5 = vector.load %arg6[%c0_6, %c0_7] : memref<8x1xf32, #tpu.memory_space<vmem>>, vector<8x1xf32>
    %c0_8 = arith.constant 0 : index
    %c0_9 = arith.constant 0 : index
    %c0_10 = arith.constant 0 : index
    %c0_11 = arith.constant 0 : index
    %6 = vector.load %arg2[%c0_8, %c0_9, %c0_10, %c0_11] : memref<1x3x4x8xbf16, #tpu.memory_space<vmem>>, vector<1x1x4x8xbf16>
    %7 = vector.shape_cast %6 : vector<1x1x4x8xbf16> to vector<4x8xbf16>
    %cst = arith.constant dense<0.000000e+00> : vector<16x8xf32>
    %8 = tpu.matmul %2, %7, %cst {dimension_numbers = #tpu.dot_dimension_numbers<[1], [0], [0], [1], [0, 0, 1, 1], [], []>} : vector<16x4xbf16>, vector<4x8xbf16>, vector<16x8xf32> -> vector<16x8xf32>
    %9 = vector.extract_strided_slice %8 {offsets = [0, 0], sizes = [8, 8], strides = [1, 1]} : vector<16x8xf32> to vector<8x8xf32>
    %10 = vector.broadcast %3 : vector<8x1xf32> to vector<8x8xf32>
    %11 = arith.addf %9, %10 : vector<8x8xf32>
    %12 = vector.extract_strided_slice %8 {offsets = [8, 0], sizes = [8, 8], strides = [1, 1]} : vector<16x8xf32> to vector<8x8xf32>
    %cst_12 = arith.constant 0.000000e+00 : f32
    %13 = vector.broadcast %cst_12 : f32 to vector<8x8xf32>
    %14 = arith.cmpf oge, %11, %13 : vector<8x8xf32>
    %15 = vector.broadcast %0 : f32 to vector<8x8xf32>
    %16 = arith.mulf %15, %11 : vector<8x8xf32>
    %17 = arith.select %14, %11, %16 : vector<8x8xi1>, vector<8x8xf32>
    %18 = arith.truncf %17 : vector<8x8xf32> to vector<8x8xbf16>
    %cst_13 = arith.constant dense<0.000000e+00> : vector<8x8xf32>
    %19 = tpu.matmul %4, %18, %cst_13 {dimension_numbers = #tpu.dot_dimension_numbers<[1], [0], [0], [1], [0, 0, 1, 1], [], []>} : vector<8x8xbf16>, vector<8x8xbf16>, vector<8x8xf32> -> vector<8x8xf32>
    %20 = vector.broadcast %5 : vector<8x1xf32> to vector<8x8xf32>
    %21 = arith.addf %19, %20 : vector<8x8xf32>
    %22 = arith.addf %21, %12 : vector<8x8xf32>
    %cst_14 = arith.constant 0.000000e+00 : f32
    %23 = vector.broadcast %cst_14 : f32 to vector<8x8xf32>
    %24 = arith.cmpf oge, %22, %23 : vector<8x8xf32>
    %25 = vector.broadcast %1 : f32 to vector<8x8xf32>
    %26 = arith.mulf %25, %22 : vector<8x8xf32>
    %27 = arith.select %24, %22, %26 : vector<8x8xi1>, vector<8x8xf32>
    %c0_15 = arith.constant 0 : index
    %c1_16 = arith.constant 1 : index
    %c0_17 = arith.constant 0 : index
    %c0_18 = arith.constant 0 : index
    %28 = vector.load %arg2[%c0_15, %c1_16, %c0_17, %c0_18] : memref<1x3x4x8xbf16, #tpu.memory_space<vmem>>, vector<1x1x4x8xbf16>
    %29 = vector.shape_cast %28 : vector<1x1x4x8xbf16> to vector<4x8xbf16>
    %cst_19 = arith.constant dense<0.000000e+00> : vector<16x8xf32>
    %30 = tpu.matmul %2, %29, %cst_19 {dimension_numbers = #tpu.dot_dimension_numbers<[1], [0], [0], [1], [0, 0, 1, 1], [], []>} : vector<16x4xbf16>, vector<4x8xbf16>, vector<16x8xf32> -> vector<16x8xf32>
    %31 = vector.extract_strided_slice %30 {offsets = [0, 0], sizes = [8, 8], strides = [1, 1]} : vector<16x8xf32> to vector<8x8xf32>
    %32 = vector.broadcast %3 : vector<8x1xf32> to vector<8x8xf32>
    %33 = arith.addf %31, %32 : vector<8x8xf32>
    %34 = vector.extract_strided_slice %30 {offsets = [8, 0], sizes = [8, 8], strides = [1, 1]} : vector<16x8xf32> to vector<8x8xf32>
    %cst_20 = arith.constant 0.000000e+00 : f32
    %35 = vector.broadcast %cst_20 : f32 to vector<8x8xf32>
    %36 = arith.cmpf oge, %33, %35 : vector<8x8xf32>
    %37 = vector.broadcast %0 : f32 to vector<8x8xf32>
    %38 = arith.mulf %37, %33 : vector<8x8xf32>
    %39 = arith.select %36, %33, %38 : vector<8x8xi1>, vector<8x8xf32>
    %40 = arith.truncf %39 : vector<8x8xf32> to vector<8x8xbf16>
    %cst_21 = arith.constant dense<0.000000e+00> : vector<8x8xf32>
    %41 = tpu.matmul %4, %40, %cst_21 {dimension_numbers = #tpu.dot_dimension_numbers<[1], [0], [0], [1], [0, 0, 1, 1], [], []>} : vector<8x8xbf16>, vector<8x8xbf16>, vector<8x8xf32> -> vector<8x8xf32>
    %42 = vector.broadcast %5 : vector<8x1xf32> to vector<8x8xf32>
    %43 = arith.addf %41, %42 : vector<8x8xf32>
    %44 = arith.addf %43, %34 : vector<8x8xf32>
    %cst_22 = arith.constant 0.000000e+00 : f32
    %45 = vector.broadcast %cst_22 : f32 to vector<8x8xf32>
    %46 = arith.cmpf oge, %44, %45 : vector<8x8xf32>
    %47 = vector.broadcast %1 : f32 to vector<8x8xf32>
    %48 = arith.mulf %47, %44 : vector<8x8xf32>
    %49 = arith.select %46, %44, %48 : vector<8x8xi1>, vector<8x8xf32>
    %50 = arith.maximumf %27, %49 : vector<8x8xf32>
    %c0_23 = arith.constant 0 : index
    %c2 = arith.constant 2 : index
    %c0_24 = arith.constant 0 : index
    %c0_25 = arith.constant 0 : index
    %51 = vector.load %arg2[%c0_23, %c2, %c0_24, %c0_25] : memref<1x3x4x8xbf16, #tpu.memory_space<vmem>>, vector<1x1x4x8xbf16>
    %52 = vector.shape_cast %51 : vector<1x1x4x8xbf16> to vector<4x8xbf16>
    %cst_26 = arith.constant dense<0.000000e+00> : vector<16x8xf32>
    %53 = tpu.matmul %2, %52, %cst_26 {dimension_numbers = #tpu.dot_dimension_numbers<[1], [0], [0], [1], [0, 0, 1, 1], [], []>} : vector<16x4xbf16>, vector<4x8xbf16>, vector<16x8xf32> -> vector<16x8xf32>
    %54 = vector.extract_strided_slice %53 {offsets = [0, 0], sizes = [8, 8], strides = [1, 1]} : vector<16x8xf32> to vector<8x8xf32>
    %55 = vector.broadcast %3 : vector<8x1xf32> to vector<8x8xf32>
    %56 = arith.addf %54, %55 : vector<8x8xf32>
    %57 = vector.extract_strided_slice %53 {offsets = [8, 0], sizes = [8, 8], strides = [1, 1]} : vector<16x8xf32> to vector<8x8xf32>
    %cst_27 = arith.constant 0.000000e+00 : f32
    %58 = vector.broadcast %cst_27 : f32 to vector<8x8xf32>
    %59 = arith.cmpf oge, %56, %58 : vector<8x8xf32>
    %60 = vector.broadcast %0 : f32 to vector<8x8xf32>
    %61 = arith.mulf %60, %56 : vector<8x8xf32>
    %62 = arith.select %59, %56, %61 : vector<8x8xi1>, vector<8x8xf32>
    %63 = arith.truncf %62 : vector<8x8xf32> to vector<8x8xbf16>
    %cst_28 = arith.constant dense<0.000000e+00> : vector<8x8xf32>
    %64 = tpu.matmul %4, %63, %cst_28 {dimension_numbers = #tpu.dot_dimension_numbers<[1], [0], [0], [1], [0, 0, 1, 1], [], []>} : vector<8x8xbf16>, vector<8x8xbf16>, vector<8x8xf32> -> vector<8x8xf32>
    %65 = vector.broadcast %5 : vector<8x1xf32> to vector<8x8xf32>
    %66 = arith.addf %64, %65 : vector<8x8xf32>
    %67 = arith.addf %66, %57 : vector<8x8xf32>
    %cst_29 = arith.constant 0.000000e+00 : f32
    %68 = vector.broadcast %cst_29 : f32 to vector<8x8xf32>
    %69 = arith.cmpf oge, %67, %68 : vector<8x8xf32>
    %70 = vector.broadcast %1 : f32 to vector<8x8xf32>
    %71 = arith.mulf %70, %67 : vector<8x8xf32>
    %72 = arith.select %69, %67, %71 : vector<8x8xi1>, vector<8x8xf32>
    %73 = arith.maximumf %50, %72 : vector<8x8xf32>
    %c0_30 = arith.constant 0 : index
    %c0_31 = arith.constant 0 : index
    %c0_32 = arith.constant 0 : index
    %74 = vector.load %arg8[%c0_30, %c0_31, %c0_32] : memref<1x8x8xf32, #tpu.memory_space<vmem>>, vector<1x8x8xf32>
    %75 = vector.shape_cast %74 : vector<1x8x8xf32> to vector<8x8xf32>
    %76 = vector.shape_cast %73 : vector<8x8xf32> to vector<1x8x8xf32>
    tpu.vector_store %arg8[%c0_30, %c0_31, %c0_32], %76 {strides = array<i32>} : memref<1x8x8xf32, #tpu.memory_space<vmem>>, vector<1x8x8xf32>,
    return
  }
  func.func @transform_0(%arg0: i32, %arg1: i32) -> (i32, i32, i32, i32) {
    %c0_i32 = arith.constant 0 : i32
    %c0_i32_0 = arith.constant 0 : i32
    %c0_i32_1 = arith.constant 0 : i32
    return %arg0, %c0_i32, %c0_i32_0, %arg1 : i32, i32, i32, i32
  }
  func.func @transform_1(%arg0: i32, %arg1: i32) -> (i32, i32) {
    %c0_i32 = arith.constant 0 : i32
    %c0_i32_0 = arith.constant 0 : i32
    %c0_i32_1 = arith.constant 0 : i32
    return %c0_i32, %c0_i32_0 : i32, i32
  }
  func.func @transform_2(%arg0: i32, %arg1: i32) -> (i32, i32) {
    %c0_i32 = arith.constant 0 : i32
    %c0_i32_0 = arith.constant 0 : i32
    %c0_i32_1 = arith.constant 0 : i32
    return %c0_i32, %c0_i32_0 : i32, i32
  }
  func.func @transform_3(%arg0: i32, %arg1: i32) -> (i32, i32) {
    %c0_i32 = arith.constant 0 : i32
    %c0_i32_0 = arith.constant 0 : i32
    %c0_i32_1 = arith.constant 0 : i32
    return %c0_i32, %c0_i32_0 : i32, i32
  }
  func.func @transform_4(%arg0: i32, %arg1: i32) -> (i32, i32) {
    %c0_i32 = arith.constant 0 : i32
    %c0_i32_0 = arith.constant 0 : i32
    %c0_i32_1 = arith.constant 0 : i32
    return %c0_i32, %c0_i32_0 : i32, i32
  }
  func.func @transform_5(%arg0: i32, %arg1: i32) -> i32 {
    %c0_i32 = arith.constant 0 : i32
    %c0_i32_0 = arith.constant 0 : i32
    return %c0_i32 : i32
  }
  func.func @transform_6(%arg0: i32, %arg1: i32) -> (i32, i32, i32) {
    %c0_i32 = arith.constant 0 : i32
    %c0_i32_0 = arith.constant 0 : i32
    return %arg0, %c0_i32, %arg1 : i32, i32, i32
  }
}

</mosaic_0001>

<llo_original>
// kernel: res_block.1
$region0: #{res_block.1}
  #allocation0 [shape = 'u32[]', space=smem, size = 0x4, offset = 0x4, fixed_abs, tag = 'smem constant byte address 0x4 - core index']
  #allocation1 [shape = 'u32[144,128]{1,0:T(1,128)}', space=vmem, size = 0x12000, scoped, tag = 'internal scratch']
  %s0 = inlined_call_operand.vmem [shape: bf16[2,3,4,8], index: 0, kind: input, shape index: {}]
  %s1 = inlined_call_operand.vmem [shape: bf16[16,4], index: 1, kind: input, shape index: {}]
  %s2 = inlined_call_operand.vmem [shape: f32[8,1], index: 2, kind: input, shape index: {}]
  %s3 = inlined_call_operand.vmem [shape: bf16[8,8], index: 3, kind: input, shape index: {}]
  %s4 = inlined_call_operand.vmem [shape: f32[8,1], index: 4, kind: input, shape index: {}]
  %s5 = inlined_call_operand.vmem [shape: f32[2], index: 5, kind: input, shape index: {}]
  %s6 = inlined_call_operand.hbm [shape: f32[2,8,8], index: 6, kind: output, shape index: {}]
  %s7 = sld [smem:[#allocation0]]
  $region61: #{res_block.1} parent=0
    _
  %s9 = ssub.s32 1, %s7
  %s10 = scalar_select 0, %s9, %s7
  $region1: #{res_block.1} parent=0
    #allocation2 [shape = 'u8[512]{0}', space=smem, size = 0x200, scoped, tag = 'input window, operand 5, single buffered']
    #allocation3 [shape = 's32[2]{0}', space=sflag, size = 0x8, scoped, tag = 'scoped memory for res_block.1']
    #allocation4 [shape = 's32[2]{0}', space=sflag, size = 0x8, scoped, tag = 'scoped memory for res_block.1']
    #allocation5 [shape = 'u8[8192]{0}', space=vmem, size = 0x2000, scoped, tag = 'output window, operand 0']
    %11 = vsyncpa [#allocation4], 0
    %12 = vsyncpa [#allocation3], 0
    %s13 = scalar_lea.sflag [#allocation3], 1
    %14 = vsyncpa %s13, 0
    loop: start=0, step=1, limit=4
    $region2: #{res_block.1} parent=1 // loop_pre_header
      _
    $region3: #{res_block.1} parent=1 // loop_header
      %s16 = sphi 0, %s20
      %p17 = scmp.ge.s32.totalorder %s16, 4
      %s23 = sphi 0, %s35
      %s24 = sphi 0, %s31
      %s25 = sphi 0, %s23
      %s26 = sphi 0, %s24
      %s27 = sphi 0, %s25
      %s28 = sphi 0, %s26
      %s40 = sphi 0, %s42
      %s43 = sphi 0, %s40
      %s44 = sphi 0, %s43
      %s60 = sphi 0, %s44
      %s64 = sphi 0, %s64
      %s66 = sphi 0, %s64
      %s67 = sphi 0, %s66
      %s81 = sphi 0, %s67
      %s85 = sphi 0, %s85
      %s87 = sphi 0, %s85
      %s88 = sphi 0, %s87
      %s102 = sphi 0, %s88
      %s106 = sphi 0, %s106
      %s108 = sphi 0, %s106
      %s109 = sphi 0, %s108
      %s123 = sphi 0, %s109
      %s127 = sphi 0, %s127
      %s129 = sphi 0, %s127
      %s130 = sphi 0, %s129
      %s144 = sphi 0, %s130
      %s148 = sphi 0, %s148
      %s150 = sphi 0, %s148
      %s151 = sphi 0, %s150
      %s165 = sphi 0, %s151
      %s173 = sphi 0, %s175
      %s176 = sphi 0, %s173
      %s177 = sphi 0, %s176
      %s193 = sphi 0, %s177
    $region4: #{res_block.1} parent=1 // loop_header_branch
      %19 = sbr.rel (%p17) target = $region8
    $region5: #{res_block.1} parent=1 // loop_body
      %s21 = ssub.s32 %s16, 1
      %s22 = ssub.s32 %s16, 2
      %s29 = sadd.s32 1, %s24
      %p30 = scmp.ge.s32.totalorder %s29, 1
      %s31 = scalar_select %p30, 0, %s29
      %s32 = sadd.s32 1, %s23
      %s33 = scalar_select %p30, %s32, %s23
      %p34 = scmp.ge.s32.totalorder %s33, 2
      %s35 = scalar_select %p34, 0, %s33
      %s36 = ssub.s32 %s23, %s35
      %s37 = ssub.s32 %s24, %s31
      %s38 = sor.u32 %s36, %s37
      %p39 = scmp.eq.s32.totalorder %s38, 0
      %s41 = sadd.s32 %s40, 1
      %s42 = scalar_select %p39, %s40, %s41
      %p45 = pneg %p39
      %p46 = scmp.eq.s32.totalorder %s16, 1
      %p47 = por %p45, %p46
      %p48 = scmp.ne.s32.totalorder %s40, %s43
      %p49 = scmp.eq.s32.totalorder %s16, 0
      %p50 = por %p48, %p49
      %p51 = scmp.ne.s32.totalorder %s40, %s43
      %p52 = scmp.eq.s32.totalorder %s21, 1
      %p53 = por %p51, %p52
      %p54 = scmp.ne.s32.totalorder %s43, %s44
      %p55 = scmp.eq.s32.totalorder %s21, 0
      %p56 = por %p54, %p55
      %p57 = scmp.ne.s32.totalorder %s43, %s44
      %p58 = scmp.eq.s32.totalorder %s22, 1
      %p59 = por %p57, %p58
      %p61 = scmp.ne.s32.totalorder %s44, %s60
      %p62 = scmp.eq.s32.totalorder %s22, 0
      %p63 = por %p61, %p62
      %s65 = sadd.s32 %s64, 1
      %p68 = scmp.eq.s32.totalorder %s16, 1
      %p69 = scmp.ne.s32.totalorder %s64, %s66
      %p70 = scmp.eq.s32.totalorder %s16, 0
      %p71 = por %p69, %p70
      %p72 = scmp.ne.s32.totalorder %s64, %s66
      %p73 = scmp.eq.s32.totalorder %s21, 1
      %p74 = por %p72, %p73
      %p75 = scmp.ne.s32.totalorder %s66, %s67
      %p76 = scmp.eq.s32.totalorder %s21, 0
      %p77 = por %p75, %p76
      %p78 = scmp.ne.s32.totalorder %s66, %s67
      %p79 = scmp.eq.s32.totalorder %s22, 1
      %p80 = por %p78, %p79
      %p82 = scmp.ne.s32.totalorder %s67, %s81
      %p83 = scmp.eq.s32.totalorder %s22, 0
      %p84 = por %p82, %p83
      %s86 = sadd.s32 %s85, 1
      %p89 = scmp.eq.s32.totalorder %s16, 1
      %p90 = scmp.ne.s32.totalorder %s85, %s87
      %p91 = scmp.eq.s32.totalorder %s16, 0
      %p92 = por %p90, %p91
      %p93 = scmp.ne.s32.totalorder %s85, %s87
      %p94 = scmp.eq.s32.totalorder %s21, 1
      %p95 = por %p93, %p94
      %p96 = scmp.ne.s32.totalorder %s87, %s88
      %p97 = scmp.eq.s32.totalorder %s21, 0
      %p98 = por %p96, %p97
      %p99 = scmp.ne.s32.totalorder %s87, %s88
      %p100 = scmp.eq.s32.totalorder %s22, 1
      %p101 = por %p99, %p100
      %p103 = scmp.ne.s32.totalorder %s88, %s102
      %p104 = scmp.eq.s32.totalorder %s22, 0
      %p105 = por %p103, %p104
      %s107 = sadd.s32 %s106, 1
      %p110 = scmp.eq.s32.totalorder %s16, 1
      %p111 = scmp.ne.s32.totalorder %s106, %s108
      %p112 = scmp.eq.s32.totalorder %s16, 0
      %p113 = por %p111, %p112
      %p114 = scmp.ne.s32.totalorder %s106, %s108
      %p115 = scmp.eq.s32.totalorder %s21, 1
      %p116 = por %p114, %p115
      %p117 = scmp.ne.s32.totalorder %s108, %s109
      %p118 = scmp.eq.s32.totalorder %s21, 0
      %p119 = por %p117, %p118
      %p120 = scmp.ne.s32.totalorder %s108, %s109
      %p121 = scmp.eq.s32.totalorder %s22, 1
      %p122 = por %p120, %p121
      %p124 = scmp.ne.s32.totalorder %s109, %s123
      %p125 = scmp.eq.s32.totalorder %s22, 0
      %p126 = por %p124, %p125
      %s128 = sadd.s32 %s127, 1
      %p131 = scmp.eq.s32.totalorder %s16, 1
      %p132 = scmp.ne.s32.totalorder %s127, %s129
      %p133 = scmp.eq.s32.totalorder %s16, 0
      %p134 = por %p132, %p133
      %p135 = scmp.ne.s32.totalorder %s127, %s129
      %p136 = scmp.eq.s32.totalorder %s21, 1
      %p137 = por %p135, %p136
      %p138 = scmp.ne.s32.totalorder %s129, %s130
      %p139 = scmp.eq.s32.totalorder %s21, 0
      %p140 = por %p138, %p139
      %p141 = scmp.ne.s32.totalorder %s129, %s130
      %p142 = scmp.eq.s32.totalorder %s22, 1
      %p143 = por %p141, %p142
      %p145 = scmp.ne.s32.totalorder %s130, %s144
      %p146 = scmp.eq.s32.totalorder %s22, 0
      %p147 = por %p145, %p146
      %s149 = sadd.s32 %s148, 1
      %p152 = scmp.eq.s32.totalorder %s16, 1
      %p153 = scmp.ne.s32.totalorder %s148, %s150
      %p154 = scmp.eq.s32.totalorder %s16, 0
      %p155 = por %p153, %p154
      %p156 = scmp.ne.s32.totalorder %s148, %s150
      %p157 = scmp.eq.s32.totalorder %s21, 1
      %p158 = por %p156, %p157
      %p159 = scmp.ne.s32.totalorder %s150, %s151
      %p160 = scmp.eq.s32.totalorder %s21, 0
      %p161 = por %p159, %p160
      %p162 = scmp.ne.s32.totalorder %s150, %s151
      %p163 = scmp.eq.s32.totalorder %s22, 1
      %p164 = por %p162, %p163
      %p166 = scmp.ne.s32.totalorder %s151, %s165
      %p167 = scmp.eq.s32.totalorder %s22, 0
      %p168 = por %p166, %p167
      %s169 = ssub.s32 %s23, %s35
      %s170 = ssub.s32 %s24, %s31
      %s171 = sor.u32 %s169, %s170
      %p172 = scmp.eq.s32.totalorder %s171, 0
      %s174 = sadd.s32 %s173, 1
      %s175 = scalar_select %p172, %s173, %s174
      %p178 = pneg %p172
      %p179 = scmp.eq.s32.totalorder %s16, 1
      %p180 = por %p178, %p179
      %p181 = scmp.ne.s32.totalorder %s173, %s176
      %p182 = scmp.eq.s32.totalorder %s16, 0
      %p183 = por %p181, %p182
      %p184 = scmp.ne.s32.totalorder %s173, %s176
      %p185 = scmp.eq.s32.totalorder %s21, 1
      %p186 = por %p184, %p185
      %p187 = scmp.ne.s32.totalorder %s176, %s177
      %p188 = scmp.eq.s32.totalorder %s21, 0
      %p189 = por %p187, %p188
      %p190 = scmp.ne.s32.totalorder %s176, %s177
      %p191 = scmp.eq.s32.totalorder %s22, 1
      %p192 = por %p190, %p191
      %p194 = scmp.ne.s32.totalorder %s177, %s193
      %p195 = scmp.eq.s32.totalorder %s22, 0
      %p196 = por %p194, %p195
      %p197 = scmp.le.s32.totalorder 1, %s16
      %p198 = scmp.lt.s32.totalorder %s16, 3
      %p199 = pnand %p197, %p198
      %p200 = pneg %p199
      // Predicated region
      $region9: #{res_block.1} parent=5 // pred_check
        _
      $region10: #{res_block.1} parent=5 // pred_check_branch
        %202 = sbr.rel (%p199) target = $region12
      $region11: #{res_block.1} parent=5 // pred_region
        %s203 = ssub.s32 %s16, 1
        // Predicated region
        $region13: #{res_block.1} parent=11 // pred_check
          %p204 = pneg %p77
        $region14: #{res_block.1} parent=11 // pred_check_branch
          %206 = sbr.rel (%p204) target = $region16
        $region15: #{res_block.1} parent=11 // pred_region
          _
        $region16: #{res_block.1} parent=11 // pred_fallthru
          _
        // Predicated region
        $region17: #{res_block.1} parent=11 // pred_check
          %p207 = pneg %p98
        $region18: #{res_block.1} parent=11 // pred_check_branch
          %209 = sbr.rel (%p207) target = $region20
        $region19: #{res_block.1} parent=11 // pred_region
          _
        $region20: #{res_block.1} parent=11 // pred_fallthru
          _
        // Predicated region
        $region21: #{res_block.1} parent=11 // pred_check
          %p210 = pneg %p119
        $region22: #{res_block.1} parent=11 // pred_check_branch
          %212 = sbr.rel (%p210) target = $region24
        $region23: #{res_block.1} parent=11 // pred_region
          _
        $region24: #{res_block.1} parent=11 // pred_fallthru
          _
        // Predicated region
        $region25: #{res_block.1} parent=11 // pred_check
          %p213 = pneg %p140
        $region26: #{res_block.1} parent=11 // pred_check_branch
          %215 = sbr.rel (%p213) target = $region28
        $region27: #{res_block.1} parent=11 // pred_region
          _
        $region28: #{res_block.1} parent=11 // pred_fallthru
          _
        // Predicated region
        $region29: #{res_block.1} parent=11 // pred_check
          %p216 = pneg %p161
        $region30: #{res_block.1} parent=11 // pred_check_branch
          %218 = sbr.rel (%p216) target = $region32
        $region31: #{res_block.1} parent=11 // pred_region
          %s220 = ssub.s32 16, 16
          %221 = vsyncadd [#allocation4], %s220
          %s223 = sshll.u32 %s5, 4
          %s224 = int_to_ptr.vmem [resolvable:$true] %s223
          %226 = dma.vmem_to_smem %s224, 16, [#allocation2], [#allocation4]
        $region32: #{res_block.1} parent=11 // pred_fallthru
          _
      $region12: #{res_block.1} parent=5 // pred_fallthru
        _
      %p227 = scmp.lt.s32.totalorder %s16, 2
      // Predicated region
      $region33: #{res_block.1} parent=5 // pred_check
        %p228 = pneg %p227
      $region34: #{res_block.1} parent=5 // pred_check_branch
        %230 = sbr.rel (%p228) target = $region36
      $region35: #{res_block.1} parent=5 // pred_region
        // Predicated region
        $region37: #{res_block.1} parent=35 // pred_check
          %p231 = pneg %p50
        $region38: #{res_block.1} parent=35 // pred_check_branch
          %233 = sbr.rel (%p231) target = $region40
        $region39: #{res_block.1} parent=35 // pred_region
          %p234 = scmp.lt.s32.totalorder %s23, 1
          %s235 = scalar_select %p234, %s23, 1
          %p236 = scmp.lt.s32.totalorder %s24, 0
          %s237 = scalar_select %p236, %s24, 0
          %s238 = smul.addr %s235, 3
          %s239 = sadd.s32 %s237, %s238
          %s240 = smul.addr %s239, 2
          %s241 = scalar_lea.vmem %s0, %s240
        $region40: #{res_block.1} parent=35 // pred_fallthru
          _
      $region36: #{res_block.1} parent=5 // pred_fallthru
        _
      %p242 = scmp.le.s32.totalorder 1, %s16
      %p243 = scmp.lt.s32.totalorder %s16, 3
      %p244 = pnand %p242, %p243
      %p245 = pneg %p244
      // Predicated region
      $region41: #{res_block.1} parent=5 // pred_check
        _
      $region42: #{res_block.1} parent=5 // pred_check_branch
        %247 = sbr.rel (%p244) target = $region44
      $region43: #{res_block.1} parent=5 // pred_region
        %s248 = ssub.s32 %s16, 1
        // Predicated region
        $region45: #{res_block.1} parent=43 // pred_check
          %p249 = pneg %p161
        $region46: #{res_block.1} parent=43 // pred_check_branch
          %251 = sbr.rel (%p249) target = $region48
        $region47: #{res_block.1} parent=43 // pred_region
          %252 = dma.done [#allocation4], 16
        $region48: #{res_block.1} parent=43 // pred_fallthru
          _
        %253 = sfence
        %p254 = scmp.lt.s32.totalorder %s25, 1
        %s255 = scalar_select %p254, %s25, 1
        %p256 = scmp.lt.s32.totalorder %s26, 0
        %s257 = scalar_select %p256, %s26, 0
        %s258 = smul.addr %s255, 3
        %s259 = sadd.s32 %s257, %s258
        %s260 = smul.addr %s259, 2
        %s261 = scalar_lea.vmem %s0, %s260
        %p262 = pneg %p56
        %p263 = pneg %p53
        %p264 = pneg %p77
        %p265 = pneg %p74
        %p266 = pneg %p98
        %p267 = pneg %p95
        %p268 = pneg %p119
        %p269 = pneg %p116
        %p270 = pneg %p140
        %p271 = pneg %p137
        %p272 = pneg %p161
        %p273 = pneg %p158
        %p274 = pneg %p189
        %p275 = pneg %p186
        %s276 = sand.u32 %s176, 1
        %s277 = scalar_lea.sflag [#allocation3], %s276
        %s278 = sand.u32 %s176, 1
        %s279 = smul.addr %s278, 8
        %s280 = scalar_lea.vmem [#allocation5], %s279
        %p281 = scmp.lt.s32.totalorder %s25, 1
        %s282 = scalar_select %p281, %s25, 1
        %p283 = scmp.lt.s32.totalorder %s26, 0
        %s284 = scalar_select %p283, %s26, 0
        %s285 = smul.addr %s282, 3
        %s286 = sadd.s32 %s284, %s285
        %s287 = smul.addr %s286, 2
        %s288 = scalar_lea.vmem %s0, %s287
        %s290 = sld [smem:[#allocation2]]
        %s291 = sld [smem:[#allocation2 + $0x1]]
        %v292 = vld [vmem:[%s1] sm:$0xf]
        %v293 = vld [vmem:[%s1 + $0x4] sm:$0xf]
        %v294 = vld [vmem:[%s2] sm:$0xff]
        %v295 = vld [vmem:[%s3] sm:$0xf]
        %v296 = vld [vmem:[%s4] sm:$0xff]
        %v297 = vld [vmem:[%s288] sm:$0x3]
        %v300 = vunpack.c.l.b16 %v292
        %v301 = vunpack.c.l.b16 %v293
        %v302 = vpack.c.b16 %v301, %v300
        %vm303 = vcmask 31744
        %v305 = vsel %vm303, %v302, 0
        %vm307 = vcmask 1041408
        %v309 = vsel %vm307, %v297, 0
        %311 = vmatprep.subr.bf16.mxu0 0
        %312 = vmatpush1.bf16.msra.mxu0 %v309
        %313 = vmatprep.subr.bf16.mxu0 0
        %314 = vmatpush1.bf16.msra.mxu0 0
        %315 = vmatprep.subr.bf16.mxu0 0
        %316 = vmatpush1.bf16.msra.mxu0 0
        %317 = vmatprep.subr.bf16.mxu0 0
        %318 = vmatpush1.bf16.msra.mxu0 0
        %319 = vmatprep.subr.bf16.mxu0 0
        %320 = vmatpush1.bf16.msra.mxu0 0
        %321 = vmatprep.subr.bf16.mxu0 0
        %322 = vmatpush1.bf16.msra.mxu0 0
        %323 = vmatprep.subr.bf16.mxu0 0
        %324 = vmatpush1.bf16.msra.mxu0 0
        %325 = vmatprep.subr.bf16.mxu0 0
        %326 = vmatpush1.bf16.msra.mxu0 0
        %327 = vmatprep.subr.bf16.mxu0 0
        %328 = vmatpush1.bf16.msra.mxu0 0
        %329 = vmatprep.subr.bf16.mxu0 0
        %330 = vmatpush1.bf16.msra.mxu0 0
        %331 = vmatprep.subr.bf16.mxu0 0
        %332 = vmatpush1.bf16.msra.mxu0 0
        %333 = vmatprep.subr.bf16.mxu0 0
        %334 = vmatpush1.bf16.msra.mxu0 0
        %335 = vmatprep.subr.bf16.mxu0 0
        %336 = vmatpush1.bf16.msra.mxu0 0
        %337 = vmatprep.subr.bf16.mxu0 0
        %338 = vmatpush1.bf16.msra.mxu0 0
        %339 = vmatprep.subr.bf16.mxu0 0
        %340 = vmatpush1.bf16.msra.mxu0 0
        %341 = vmatprep.subr.bf16.mxu0 0
        %342 = vmatpush1.bf16.msra.mxu0 0
        %343 = vmatprep.mubr.bf16.mxu0 0
        %344 = vmatmul.mubr.bf16.gmra.mrb[0].mxu0 %v305
        %v345 = vpop.f32.mrb[0].mxu0
        %v346 = vadd.f32 0.0, %v345
        %v347 = vpop.f32.mrb[0].mxu0
        %v348 = vpop.f32.mrb[0].mxu0
        %v349 = vadd.f32 0.0, %v348
        %v350 = vpop.f32.mrb[0].mxu0
        %351 = vdwg.mxu0
        %353 = vset.pattern.permute.xlu0 0
        %354 = vperm.xlu0 %353, %v294
        %v355 = vpop.permute.xlu0 %354
        %v357 = vadd.f32 %v346, %v355
        %vm358 = vcmp.ge.f32.partialorder %v357, 0.0
        %v359 = vstv %s290
        %v360 = vmul.f32 %v359, %v357
        %v361 = vsel %vm358, %v357, %v360
        %v362 = vpack.c.bf16 %v361, %v361
        %364 = vset.pattern.permute.xlu0 0
        %365 = vperm.xlu0 %364, %v296
        %v366 = vpop.permute.xlu0 %365
        %vm368 = vcmask 64512
        %v370 = vsel %vm368, %v295, 0
        %vm372 = vcmask 1043456
        %v374 = vsel %vm372, %v362, 0
        %376 = vmatprep.subr.bf16.mxu0 0
        %377 = vmatpush1.bf16.msra.mxu0 %v374
        %378 = vmatprep.subr.bf16.mxu0 0
        %379 = vmatpush1.bf16.msra.mxu0 0
        %380 = vmatprep.subr.bf16.mxu0 0
        %381 = vmatpush1.bf16.msra.mxu0 0
        %382 = vmatprep.subr.bf16.mxu0 0
        %383 = vmatpush1.bf16.msra.mxu0 0
        %384 = vmatprep.subr.bf16.mxu0 0
        %385 = vmatpush1.bf16.msra.mxu0 0
        %386 = vmatprep.subr.bf16.mxu0 0
        %387 = vmatpush1.bf16.msra.mxu0 0
        %388 = vmatprep.subr.bf16.mxu0 0
        %389 = vmatpush1.bf16.msra.mxu0 0
        %390 = vmatprep.subr.bf16.mxu0 0
        %391 = vmatpush1.bf16.msra.mxu0 0
        %392 = vmatprep.subr.bf16.mxu0 0
        %393 = vmatpush1.bf16.msra.mxu0 0
        %394 = vmatprep.subr.bf16.mxu0 0
        %395 = vmatpush1.bf16.msra.mxu0 0
        %396 = vmatprep.subr.bf16.mxu0 0
        %397 = vmatpush1.bf16.msra.mxu0 0
        %398 = vmatprep.subr.bf16.mxu0 0
        %399 = vmatpush1.bf16.msra.mxu0 0
        %400 = vmatprep.subr.bf16.mxu0 0
        %401 = vmatpush1.bf16.msra.mxu0 0
        %402 = vmatprep.subr.bf16.mxu0 0
        %403 = vmatpush1.bf16.msra.mxu0 0
        %404 = vmatprep.subr.bf16.mxu0 0
        %405 = vmatpush1.bf16.msra.mxu0 0
        %406 = vmatprep.subr.bf16.mxu0 0
        %407 = vmatpush1.bf16.msra.mxu0 0
        %408 = vmatprep.mubr.bf16.mxu0 0
        %409 = vmatmul.mubr.bf16.gmra.mrb[0].mxu0 %v370
        %v410 = vpop.f32.mrb[0].mxu0
        %v411 = vadd.f32 %v366, %v410
        %v412 = vpop.f32.mrb[0].mxu0
        %v413 = vpop.f32.mrb[0].mxu0
        %v414 = vpop.f32.mrb[0].mxu0
        %415 = vdwg.mxu0
        %v416 = vadd.f32 %v411, %v349
        %vm417 = vcmp.ge.f32.partialorder %v416, 0.0
        %v418 = vstv %s291
        %v419 = vmul.f32 %v418, %v416
        %v420 = vsel %vm417, %v416, %v419
        %s421 = scalar_lea.vmem %s288, 2
        %v422 = vld [vmem:[%s421] sm:$0x3]
        %v424 = vsel %vm307, %v422, 0
        %426 = vmatprep.subr.bf16.mxu0 0
        %427 = vmatpush1.bf16.msra.mxu0 %v424
        %428 = vmatprep.subr.bf16.mxu0 0
        %429 = vmatpush1.bf16.msra.mxu0 0
        %430 = vmatprep.subr.bf16.mxu0 0
        %431 = vmatpush1.bf16.msra.mxu0 0
        %432 = vmatprep.subr.bf16.mxu0 0
        %433 = vmatpush1.bf16.msra.mxu0 0
        %434 = vmatprep.subr.bf16.mxu0 0
        %435 = vmatpush1.bf16.msra.mxu0 0
        %436 = vmatprep.subr.bf16.mxu0 0
        %437 = vmatpush1.bf16.msra.mxu0 0
        %438 = vmatprep.subr.bf16.mxu0 0
        %439 = vmatpush1.bf16.msra.mxu0 0
        %440 = vmatprep.subr.bf16.mxu0 0
        %441 = vmatpush1.bf16.msra.mxu0 0
        %442 = vmatprep.subr.bf16.mxu0 0
        %443 = vmatpush1.bf16.msra.mxu0 0
        %444 = vmatprep.subr.bf16.mxu0 0
        %445 = vmatpush1.bf16.msra.mxu0 0
        %446 = vmatprep.subr.bf16.mxu0 0
        %447 = vmatpush1.bf16.msra.mxu0 0
        %448 = vmatprep.subr.bf16.mxu0 0
        %449 = vmatpush1.bf16.msra.mxu0 0
        %450 = vmatprep.subr.bf16.mxu0 0
        %451 = vmatpush1.bf16.msra.mxu0 0
        %452 = vmatprep.subr.bf16.mxu0 0
        %453 = vmatpush1.bf16.msra.mxu0 0
        %454 = vmatprep.subr.bf16.mxu0 0
        %455 = vmatpush1.bf16.msra.mxu0 0
        %456 = vmatprep.subr.bf16.mxu0 0
        %457 = vmatpush1.bf16.msra.mxu0 0
        %458 = vmatprep.mubr.bf16.mxu0 0
        %459 = vmatmul.mubr.bf16.gmra.mrb[0].mxu0 %v305
        %v460 = vpop.f32.mrb[0].mxu0
        %v461 = vadd.f32 0.0, %v460
        %v462 = vpop.f32.mrb[0].mxu0
        %v463 = vpop.f32.mrb[0].mxu0
        %v464 = vadd.f32 0.0, %v463
        %v465 = vpop.f32.mrb[0].mxu0
        %466 = vdwg.mxu0
        %v467 = vadd.f32 %v461, %v355
        %vm468 = vcmp.ge.f32.partialorder %v467, 0.0
        %v469 = vmul.f32 %v359, %v467
        %v470 = vsel %vm468, %v467, %v469
        %v471 = vpack.c.bf16 %v470, %v470
        %v473 = vsel %vm372, %v471, 0
        %475 = vmatprep.subr.bf16.mxu0 0
        %476 = vmatpush1.bf16.msra.mxu0 %v473
        %477 = vmatprep.subr.bf16.mxu0 0
        %478 = vmatpush1.bf16.msra.mxu0 0
        %479 = vmatprep.subr.bf16.mxu0 0
        %480 = vmatpush1.bf16.msra.mxu0 0
        %481 = vmatprep.subr.bf16.mxu0 0
        %482 = vmatpush1.bf16.msra.mxu0 0
        %483 = vmatprep.subr.bf16.mxu0 0
        %484 = vmatpush1.bf16.msra.mxu0 0
        %485 = vmatprep.subr.bf16.mxu0 0
        %486 = vmatpush1.bf16.msra.mxu0 0
        %487 = vmatprep.subr.bf16.mxu0 0
        %488 = vmatpush1.bf16.msra.mxu0 0
        %489 = vmatprep.subr.bf16.mxu0 0
        %490 = vmatpush1.bf16.msra.mxu0 0
        %491 = vmatprep.subr.bf16.mxu0 0
        %492 = vmatpush1.bf16.msra.mxu0 0
        %493 = vmatprep.subr.bf16.mxu0 0
        %494 = vmatpush1.bf16.msra.mxu0 0
        %495 = vmatprep.subr.bf16.mxu0 0
        %496 = vmatpush1.bf16.msra.mxu0 0
        %497 = vmatprep.subr.bf16.mxu0 0
        %498 = vmatpush1.bf16.msra.mxu0 0
        %499 = vmatprep.subr.bf16.mxu0 0
        %500 = vmatpush1.bf16.msra.mxu0 0
        %501 = vmatprep.subr.bf16.mxu0 0
        %502 = vmatpush1.bf16.msra.mxu0 0
        %503 = vmatprep.subr.bf16.mxu0 0
        %504 = vmatpush1.bf16.msra.mxu0 0
        %505 = vmatprep.subr.bf16.mxu0 0
        %506 = vmatpush1.bf16.msra.mxu0 0
        %507 = vmatprep.mubr.bf16.mxu0 0
        %508 = vmatmul.mubr.bf16.gmra.mrb[0].mxu0 %v370
        %v509 = vpop.f32.mrb[0].mxu0
        %v510 = vadd.f32 %v366, %v509
        %v511 = vpop.f32.mrb[0].mxu0
        %v512 = vpop.f32.mrb[0].mxu0
        %v513 = vpop.f32.mrb[0].mxu0
        %514 = vdwg.mxu0
        %v515 = vadd.f32 %v510, %v464
        %vm516 = vcmp.ge.f32.partialorder %v515, 0.0
        %v517 = vmul.f32 %v418, %v515
        %v518 = vsel %vm516, %v515, %v517
        %v519 = vmax.f32 %v420, %v518
        %s520 = scalar_lea.vmem %s288, 4
        %v521 = vld [vmem:[%s520] sm:$0x3]
        %v523 = vsel %vm307, %v521, 0
        %525 = vmatprep.subr.bf16.mxu0 0
        %526 = vmatpush1.bf16.msra.mxu0 %v523
        %527 = vmatprep.subr.bf16.mxu0 0
        %528 = vmatpush1.bf16.msra.mxu0 0
        %529 = vmatprep.subr.bf16.mxu0 0
        %530 = vmatpush1.bf16.msra.mxu0 0
        %531 = vmatprep.subr.bf16.mxu0 0
        %532 = vmatpush1.bf16.msra.mxu0 0
        %533 = vmatprep.subr.bf16.mxu0 0
        %534 = vmatpush1.bf16.msra.mxu0 0
        %535 = vmatprep.subr.bf16.mxu0 0
        %536 = vmatpush1.bf16.msra.mxu0 0
        %537 = vmatprep.subr.bf16.mxu0 0
        %538 = vmatpush1.bf16.msra.mxu0 0
        %539 = vmatprep.subr.bf16.mxu0 0
        %540 = vmatpush1.bf16.msra.mxu0 0
        %541 = vmatprep.subr.bf16.mxu0 0
        %542 = vmatpush1.bf16.msra.mxu0 0
        %543 = vmatprep.subr.bf16.mxu0 0
        %544 = vmatpush1.bf16.msra.mxu0 0
        %545 = vmatprep.subr.bf16.mxu0 0
        %546 = vmatpush1.bf16.msra.mxu0 0
        %547 = vmatprep.subr.bf16.mxu0 0
        %548 = vmatpush1.bf16.msra.mxu0 0
        %549 = vmatprep.subr.bf16.mxu0 0
        %550 = vmatpush1.bf16.msra.mxu0 0
        %551 = vmatprep.subr.bf16.mxu0 0
        %552 = vmatpush1.bf16.msra.mxu0 0
        %553 = vmatprep.subr.bf16.mxu0 0
        %554 = vmatpush1.bf16.msra.mxu0 0
        %555 = vmatprep.subr.bf16.mxu0 0
        %556 = vmatpush1.bf16.msra.mxu0 0
        %557 = vmatprep.mubr.bf16.mxu0 0
        %558 = vmatmul.mubr.bf16.gmra.mrb[0].mxu0 %v305
        %v559 = vpop.f32.mrb[0].mxu0
        %v560 = vadd.f32 0.0, %v559
        %v561 = vpop.f32.mrb[0].mxu0
        %v562 = vpop.f32.mrb[0].mxu0
        %v563 = vadd.f32 0.0, %v562
        %v564 = vpop.f32.mrb[0].mxu0
        %565 = vdwg.mxu0
        %v566 = vadd.f32 %v560, %v355
        %vm567 = vcmp.ge.f32.partialorder %v566, 0.0
        %v568 = vmul.f32 %v359, %v566
        %v569 = vsel %vm567, %v566, %v568
        %v570 = vpack.c.bf16 %v569, %v569
        %v572 = vsel %vm372, %v570, 0
        %574 = vmatprep.subr.bf16.mxu0 0
        %575 = vmatpush1.bf16.msra.mxu0 %v572
        %576 = vmatprep.subr.bf16.mxu0 0
        %577 = vmatpush1.bf16.msra.mxu0 0
        %578 = vmatprep.subr.bf16.mxu0 0
        %579 = vmatpush1.bf16.msra.mxu0 0
        %580 = vmatprep.subr.bf16.mxu0 0
        %581 = vmatpush1.bf16.msra.mxu0 0
        %582 = vmatprep.subr.bf16.mxu0 0
        %583 = vmatpush1.bf16.msra.mxu0 0
        %584 = vmatprep.subr.bf16.mxu0 0
        %585 = vmatpush1.bf16.msra.mxu0 0
        %586 = vmatprep.subr.bf16.mxu0 0
        %587 = vmatpush1.bf16.msra.mxu0 0
        %588 = vmatprep.subr.bf16.mxu0 0
        %589 = vmatpush1.bf16.msra.mxu0 0
        %590 = vmatprep.subr.bf16.mxu0 0
        %591 = vmatpush1.bf16.msra.mxu0 0
        %592 = vmatprep.subr.bf16.mxu0 0
        %593 = vmatpush1.bf16.msra.mxu0 0
        %594 = vmatprep.subr.bf16.mxu0 0
        %595 = vmatpush1.bf16.msra.mxu0 0
        %596 = vmatprep.subr.bf16.mxu0 0
        %597 = vmatpush1.bf16.msra.mxu0 0
        %598 = vmatprep.subr.bf16.mxu0 0
        %599 = vmatpush1.bf16.msra.mxu0 0
        %600 = vmatprep.subr.bf16.mxu0 0
        %601 = vmatpush1.bf16.msra.mxu0 0
        %602 = vmatprep.subr.bf16.mxu0 0
        %603 = vmatpush1.bf16.msra.mxu0 0
        %604 = vmatprep.subr.bf16.mxu0 0
        %605 = vmatpush1.bf16.msra.mxu0 0
        %606 = vmatprep.mubr.bf16.mxu0 0
        %607 = vmatmul.mubr.bf16.gmra.mrb[0].mxu0 %v370
        %v608 = vpop.f32.mrb[0].mxu0
        %v609 = vadd.f32 %v366, %v608
        %v610 = vpop.f32.mrb[0].mxu0
        %v611 = vpop.f32.mrb[0].mxu0
        %v612 = vpop.f32.mrb[0].mxu0
        %613 = vdwg.mxu0
        %v614 = vadd.f32 %v609, %v563
        %vm615 = vcmp.ge.f32.partialorder %v614, 0.0
        %v616 = vmul.f32 %v418, %v614
        %v617 = vsel %vm615, %v614, %v616
        %v618 = vmax.f32 %v519, %v617
        %619 = vst.msk [vmem:[%s280] sm:$0xff] %vm368, %v618
        %s620 = sand.u32 %s176, 1
        %s621 = scalar_lea.sflag [#allocation3], %s620
        %s622 = sand.u32 %s176, 1
        %s623 = smul.addr %s622, 8
        %s624 = scalar_lea.vmem [#allocation5], %s623
        // Predicated region
        $region49: #{res_block.1} parent=43 // pred_check
          %p625 = pneg %p186
        $region50: #{res_block.1} parent=43 // pred_check_branch
          %627 = sbr.rel (%p625) target = $region52
        $region51: #{res_block.1} parent=43 // pred_region
          %s629 = ssub.s32 128, 128
          %630 = vsyncadd %s621, %s629
          %s631 = sadd.s32 %s26, %s25
          %s632 = smul.addr %s631, 128
          %s633 = scalar_lea.hbm %s6, %s632
          %s635 = sshll.u32 %s624, 4
          %s636 = int_to_ptr.vmem [resolvable:$true] %s635
          %638 = dma.vmem_to_hbm [thread:$0]  %s636, 128, %s633, %s621
        $region52: #{res_block.1} parent=43 // pred_fallthru
          _
      $region44: #{res_block.1} parent=5 // pred_fallthru
        _
      %p639 = scmp.le.s32.totalorder 2, %s16
      // Predicated region
      $region53: #{res_block.1} parent=5 // pred_check
        %p640 = pneg %p639
      $region54: #{res_block.1} parent=5 // pred_check_branch
        %642 = sbr.rel (%p640) target = $region56
      $region55: #{res_block.1} parent=5 // pred_region
        %s643 = ssub.s32 %s16, 2
        // Predicated region
        $region57: #{res_block.1} parent=55 // pred_check
          %p644 = pneg %p192
        $region58: #{res_block.1} parent=55 // pred_check_branch
          %646 = sbr.rel (%p644) target = $region60
        $region59: #{res_block.1} parent=55 // pred_region
          %s647 = sand.u32 %s177, 1
          %s648 = scalar_lea.sflag [#allocation3], %s647
          %s649 = sand.u32 %s177, 1
          %s650 = smul.addr %s649, 8
          %s651 = scalar_lea.vmem [#allocation5], %s650
          %652 = dma.done %s648, 128
        $region60: #{res_block.1} parent=55 // pred_fallthru
          _
      $region56: #{res_block.1} parent=5 // pred_fallthru
        _
    $region6: #{res_block.1} parent=1 // loop_footer
      %s20 = sadd.s32 1, %s16
    $region7: #{res_block.1} parent=1 // loop_footer_branch
      %15 = sbr.rel target = $region3
    $region8: #{res_block.1} parent=1 // loop_exit
      _
    %653 = vsyncpa [#allocation3], 1
    %s654 = scalar_lea.sflag [#allocation3], 1
    %655 = vsyncpa %s654, 1
    %656 = vsyncpa [#allocation4], 1
    %s657 = scalar_lea.sflag [#allocation4], 1
    %658 = vsyncpa %s657, 1

</llo_original>
